<compile_context>
chip_gen: v6e
topology: v6e:2x2x1
jax: 0.10.0
libtpu: 0.0.40
codegen_flags: <defaults>
</compile_context>

<pallas_src>
import functools

import jax
import jax.numpy as jnp
from jax import lax
from jax.experimental import pallas as pl
from jax.experimental.pallas import tpu as pltpu


def attention_relu_kernel(x_ref, r_ref, wqkv_ref, bqkv_ref, wproj_ref, bproj_ref,
                          out_ref, attn_mean_ref, unc_ref, acc_ref, *, scale):
    # x_ref:     (1, N, C)            r_ref:     (1, 1, N, N)
    # wqkv_ref:  (1, 3, C, hd)        bqkv_ref:  (1, 3, 1, hd)
    # wproj_ref: (1, hd, C)           bproj_ref: (1, C)
    # out_ref:   (1, N, C)            attn_mean_ref / unc_ref: (1, 1, N, N)
    # acc_ref:   (N, C) f32 scratch accumulated over the head grid axis.
    h = pl.program_id(1)
    num_heads = pl.num_programs(1)
    in_dtype = x_ref.dtype

    @pl.when(h == 0)
    def _init():
        acc_ref[...] = jnp.zeros_like(acc_ref)

    x = x_ref[0]                                               # (N, C), native dtype

    # Per-head q/k/v projections (summed over heads == full qkv linear).
    q = jnp.dot(x, wqkv_ref[0, 0], preferred_element_type=jnp.float32) + bqkv_ref[0, 0]
    k = jnp.dot(x, wqkv_ref[0, 1], preferred_element_type=jnp.float32) + bqkv_ref[0, 1]
    v = jnp.dot(x, wqkv_ref[0, 2], preferred_element_type=jnp.float32) + bqkv_ref[0, 2]

    # q @ k^T via contraction dimension numbers (no explicit XLU transpose).
    qk = lax.dot_general(q.astype(in_dtype), k.astype(in_dtype),
                         (((1,), (1,)), ((), ())),
                         preferred_element_type=jnp.float32)   # (N, N)

    # Stable softmax of the scaled scores (elementwise path kept in f32).
    a = qk * scale
    a = a - jnp.max(a, axis=-1, keepdims=True)
    e = jnp.exp(a)
    denom = jnp.sum(e, axis=-1, keepdims=True)
    # approx=True would offload the divide to the EUP, but perturbs the
    # softmax by ~1e-3; keep the exact reciprocal to preserve module numerics.
    attn_mean = e * pl.reciprocal(denom, approx=False)

    unc = jax.nn.sigmoid(qk)                                   # uncertainty (unscaled qk)
    r = r_ref[0, 0].astype(jnp.float32)
    attn_masked = attn_mean * (r > unc).astype(jnp.float32)    # attn_drop(p=0) = id

    # Direct per-head writes (no stack/concat; writeback DMA starts per head).
    attn_mean_ref[0, 0] = attn_mean.astype(attn_mean_ref.dtype)
    unc_ref[0, 0] = unc.astype(unc_ref.dtype)

    # Head contribution to the projected output: (attn @ v) @ Wproj[h].
    head_out = jnp.dot(attn_masked.astype(in_dtype), v.astype(in_dtype),
                       preferred_element_type=jnp.float32)     # (N, hd)
    acc_ref[...] += jnp.dot(head_out.astype(in_dtype), wproj_ref[0],
                            preferred_element_type=jnp.float32)  # (N, C)

    @pl.when(h == num_heads - 1)
    def _finalize():
        out = acc_ref[...] + bproj_ref[...].astype(jnp.float32)   # proj_drop(p=0) = id
        out_ref[...] = out[None].astype(out_ref.dtype)


def attention_relu_forward(x, r, wqkv, bqkv, wproj, bproj, heads):
    """x: (B, N, C); r: (B, H, N, N) uniform[0,1); weights in y = x @ W + b layout."""
    B, N, C = x.shape
    hd = C // heads
    scale = hd ** (-0.5)

    # Reorganise weights so every head's slab is a dense, full-width block that
    # a BlockSpec index_map can select.  Column order matches the PyTorch
    # qkv(x).reshape(B, N, 3, heads, hd) convention.
    wqkv_h = wqkv.reshape(C, 3, heads, hd).transpose(2, 1, 0, 3)             # (H, 3, C, hd)
    bqkv_h = bqkv.reshape(3, heads, hd).transpose(1, 0, 2)[:, :, None, :]    # (H, 3, 1, hd)
    wproj_h = wproj.reshape(heads, hd, C)                                    # (H, hd, C)

    kernel = functools.partial(attention_relu_kernel, scale=scale)

    out_shapes = (
        jax.ShapeDtypeStruct((B, N, C), x.dtype),               # x_out
        jax.ShapeDtypeStruct((B, heads, N, N), jnp.float32),    # attn_mean
        jax.ShapeDtypeStruct((B, heads, N, N), jnp.float32),    # uncertainty
    )
    grid_spec = pltpu.PrefetchScalarGridSpec(
        num_scalar_prefetch=0,
        grid=(B, heads),
        in_specs=[
            pl.BlockSpec((1, N, C), lambda b, h: (b, 0, 0)),          # x (resident across h)
            pl.BlockSpec((1, 1, N, N), lambda b, h: (b, h, 0, 0)),    # r, one head per step
            pl.BlockSpec((1, 3, C, hd), lambda b, h: (h, 0, 0, 0)),   # per-head qkv weights
            pl.BlockSpec((1, 3, 1, hd), lambda b, h: (h, 0, 0, 0)),   # per-head qkv bias
            pl.BlockSpec((1, hd, C), lambda b, h: (h, 0, 0)),         # per-head proj rows
            pl.BlockSpec((1, C), lambda b, h: (0, 0)),                # proj bias (resident)
        ],
        out_specs=[
            pl.BlockSpec((1, N, C), lambda b, h: (b, 0, 0)),          # accumulated over h
            pl.BlockSpec((1, 1, N, N), lambda b, h: (b, h, 0, 0)),
            pl.BlockSpec((1, 1, N, N), lambda b, h: (b, h, 0, 0)),
        ],
        scratch_shapes=[pltpu.VMEM((N, C), jnp.float32)],
    )
    return pl.pallas_call(
        kernel,
        out_shape=out_shapes,
        grid_spec=grid_spec,
        compiler_params=pltpu.CompilerParams(
            # head axis accumulates into out -> "arbitrary"; batch axis is
            # parallel so work shards across TensorCores on multi-TC parts.
            dimension_semantics=("parallel", "arbitrary"),
            # raise the scoped VMEM cap (default is 32 MiB) while staying
            # below v7x's 64 MiB physical VMEM.
            vmem_limit_bytes=48 * 1024 * 1024,
        ),
    )(x, r, wqkv_h, bqkv_h, wproj_h, bproj)


def reference_forward(x, r, wqkv, bqkv, wproj, bproj, heads):
    """Pure-JAX reference mirroring the PyTorch forward (dropout p=0)."""
    B, N, C = x.shape
    hd = C // heads
    scale = hd ** (-0.5)
    qkv = x @ wqkv + bqkv[0]                                        # (B, N, 3C)
    qkv = qkv.reshape(B, N, 3, heads, hd).transpose(2, 0, 3, 1, 4)  # (3, B, H, N, hd)
    q, k, v = qkv[0], qkv[1], qkv[2]
    qk = jnp.einsum('bhnd,bhmd->bhnm', q, k)
    attn_mean = jax.nn.softmax(qk * scale, axis=-1)
    unc = jax.nn.sigmoid(qk)
    mask = (r > unc).astype(jnp.float32)
    attn = attn_mean * mask
    out = jnp.einsum('bhnm,bhmd->bhnd', attn, v)
    out = out.transpose(0, 2, 1, 3).reshape(B, N, C)
    out = out @ wproj + bproj[0]
    return out, attn_mean, unc


if __name__ == "__main__":
    B, N, C, heads = 2, 16, 32, 4

    key = jax.random.PRNGKey(0)
    k_x, k_r, k_wq, k_bq, k_wp, k_bp = jax.random.split(key, 6)

    x = jax.random.normal(k_x, (B, N, C), dtype=jnp.float32)
    # torch.rand analogue: uniform [0, 1)
    r = jax.random.uniform(k_r, (B, heads, N, N), dtype=jnp.float32)

    # nn.Linear weights stored already-transposed: y = x @ W + b
    wqkv = jax.random.normal(k_wq, (C, 3 * C), dtype=jnp.float32) * 0.05
    bqkv = jax.random.normal(k_bq, (1, 3 * C), dtype=jnp.float32) * 0.05
    wproj = jax.random.normal(k_wp, (C, C), dtype=jnp.float32) * 0.05
    bproj = jax.random.normal(k_bp, (1, C), dtype=jnp.float32) * 0.05

    out, attn_mean, unc = attention_relu_forward(x, r, wqkv, bqkv, wproj, bproj, heads)
    out = jax.block_until_ready(out)
    attn_mean = jax.block_until_ready(attn_mean)
    unc = jax.block_until_ready(unc)

    ref_out, ref_attn, ref_unc = reference_forward(x, r, wqkv, bqkv, wproj, bproj, heads)
    assert jnp.allclose(out, ref_out, atol=1e-4, rtol=1e-4)
    assert jnp.allclose(attn_mean, ref_attn, atol=1e-5, rtol=1e-5)
    assert jnp.allclose(unc, ref_unc, atol=1e-5, rtol=1e-5)

    print("KERNEL_OK")
</pallas_src>

<mosaic_0001>
module attributes {stable_mosaic.version = 11 : i64} {
  func.func @attention_relu_kernel(%arg0: i32, %arg1: i32, %arg2: memref<1x16x32xf32, #tpu.memory_space<vmem>>, %arg3: memref<1x1x16x16xf32, #tpu.memory_space<vmem>>, %arg4: memref<1x3x32x8xf32, #tpu.memory_space<vmem>>, %arg5: memref<1x3x1x8xf32, #tpu.memory_space<vmem>>, %arg6: memref<1x8x32xf32, #tpu.memory_space<vmem>>, %arg7: memref<1x32xf32, #tpu.memory_space<vmem>>, %arg8: memref<1x16x32xf32, #tpu.memory_space<vmem>>, %arg9: memref<1x1x16x16xf32, #tpu.memory_space<vmem>>, %arg10: memref<1x1x16x16xf32, #tpu.memory_space<vmem>>, %arg11: memref<16x32xf32, #tpu.memory_space<vmem>>) attributes {dimension_semantics = [#tpu.dimension_semantics<parallel>, #tpu.dimension_semantics<arbitrary>], iteration_bounds = array<i64: 2, 4>, scalar_prefetch = 0 : i64, scratch_operands = 1 : i64, tpu.core_type = #tpu.core_type<tc>, window_params = [{transform_indices = @transform_0, window_bounds = array<i64: 1, 16, 32>}, {transform_indices = @transform_1, window_bounds = array<i64: 1, 1, 16, 16>}, {transform_indices = @transform_2, window_bounds = array<i64: 1, 3, 32, 8>}, {transform_indices = @transform_3, window_bounds = array<i64: 1, 3, 1, 8>}, {transform_indices = @transform_4, window_bounds = array<i64: 1, 8, 32>}, {pipeline_mode = #tpu.pipeline_mode<synchronous>, transform_indices = @transform_5, window_bounds = array<i64: 1, 32>}, {transform_indices = @transform_6, window_bounds = array<i64: 1, 16, 32>}, {transform_indices = @transform_7, window_bounds = array<i64: 1, 1, 16, 16>}, {transform_indices = @transform_8, window_bounds = array<i64: 1, 1, 16, 16>}]} {
    %c0_i32 = arith.constant 0 : i32
    %0 = arith.cmpi eq, %arg1, %c0_i32 : i32
    %1 = arith.extui %0 : i1 to i32
    %c0_i32_0 = arith.constant 0 : i32
    %2 = arith.cmpi ne, %1, %c0_i32_0 : i32
    scf.if %2 {
      %cst_54 = arith.constant 0.000000e+00 : f32
      %66 = vector.broadcast %cst_54 : f32 to vector<16x32xf32>
      %c0_55 = arith.constant 0 : index
      %c0_56 = arith.constant 0 : index
      %67 = vector.load %arg11[%c0_55, %c0_56] : memref<16x32xf32, #tpu.memory_space<vmem>>, vector<16x32xf32>
      tpu.vector_store %arg11[%c0_55, %c0_56], %66 {strides = array<i32>} : memref<16x32xf32, #tpu.memory_space<vmem>>, vector<16x32xf32>,
    } else {
    }
    %c0 = arith.constant 0 : index
    %c0_1 = arith.constant 0 : index
    %c0_2 = arith.constant 0 : index
    %3 = vector.load %arg2[%c0, %c0_1, %c0_2] : memref<1x16x32xf32, #tpu.memory_space<vmem>>, vector<1x16x32xf32>
    %4 = vector.shape_cast %3 : vector<1x16x32xf32> to vector<16x32xf32>
    %c0_3 = arith.constant 0 : index
    %c0_4 = arith.constant 0 : index
    %c0_5 = arith.constant 0 : index
    %c0_6 = arith.constant 0 : index
    %5 = vector.load %arg4[%c0_3, %c0_4, %c0_5, %c0_6] : memref<1x3x32x8xf32, #tpu.memory_space<vmem>>, vector<1x1x32x8xf32>
    %6 = vector.shape_cast %5 : vector<1x1x32x8xf32> to vector<32x8xf32>
    %cst = arith.constant dense<0.000000e+00> : vector<16x8xf32>
    %7 = tpu.matmul %4, %6, %cst {dimension_numbers = #tpu.dot_dimension_numbers<[1], [0], [0], [1], [0, 0, 1, 1], [], []>} : vector<16x32xf32>, vector<32x8xf32>, vector<16x8xf32> -> vector<16x8xf32>
    %c0_7 = arith.constant 0 : index
    %c0_8 = arith.constant 0 : index
    %c0_9 = arith.constant 0 : index
    %c0_10 = arith.constant 0 : index
    %8 = vector.load %arg5[%c0_7, %c0_8, %c0_9, %c0_10] : memref<1x3x1x8xf32, #tpu.memory_space<vmem>>, vector<1x1x1x8xf32>
    %9 = vector.shape_cast %8 : vector<1x1x1x8xf32> to vector<1x8xf32>
    %10 = vector.broadcast %9 : vector<1x8xf32> to vector<16x8xf32>
    %11 = arith.addf %7, %10 : vector<16x8xf32>
    %c0_11 = arith.constant 0 : index
    %c1 = arith.constant 1 : index
    %c0_12 = arith.constant 0 : index
    %c0_13 = arith.constant 0 : index
    %12 = vector.load %arg4[%c0_11, %c1, %c0_12, %c0_13] : memref<1x3x32x8xf32, #tpu.memory_space<vmem>>, vector<1x1x32x8xf32>
    %13 = vector.shape_cast %12 : vector<1x1x32x8xf32> to vector<32x8xf32>
    %cst_14 = arith.constant dense<0.000000e+00> : vector<16x8xf32>
    %14 = tpu.matmul %4, %13, %cst_14 {dimension_numbers = #tpu.dot_dimension_numbers<[1], [0], [0], [1], [0, 0, 1, 1], [], []>} : vector<16x32xf32>, vector<32x8xf32>, vector<16x8xf32> -> vector<16x8xf32>
    %c0_15 = arith.constant 0 : index
    %c1_16 = arith.constant 1 : index
    %c0_17 = arith.constant 0 : index
    %c0_18 = arith.constant 0 : index
    %15 = vector.load %arg5[%c0_15, %c1_16, %c0_17, %c0_18] : memref<1x3x1x8xf32, #tpu.memory_space<vmem>>, vector<1x1x1x8xf32>
    %16 = vector.shape_cast %15 : vector<1x1x1x8xf32> to vector<1x8xf32>
    %17 = vector.broadcast %16 : vector<1x8xf32> to vector<16x8xf32>
    %18 = arith.addf %14, %17 : vector<16x8xf32>
    %c0_19 = arith.constant 0 : index
    %c2 = arith.constant 2 : index
    %c0_20 = arith.constant 0 : index
    %c0_21 = arith.constant 0 : index
    %19 = vector.load %arg4[%c0_19, %c2, %c0_20, %c0_21] : memref<1x3x32x8xf32, #tpu.memory_space<vmem>>, vector<1x1x32x8xf32>
    %20 = vector.shape_cast %19 : vector<1x1x32x8xf32> to vector<32x8xf32>
    %cst_22 = arith.constant dense<0.000000e+00> : vector<16x8xf32>
    %21 = tpu.matmul %4, %20, %cst_22 {dimension_numbers = #tpu.dot_dimension_numbers<[1], [0], [0], [1], [0, 0, 1, 1], [], []>} : vector<16x32xf32>, vector<32x8xf32>, vector<16x8xf32> -> vector<16x8xf32>
    %c0_23 = arith.constant 0 : index
    %c2_24 = arith.constant 2 : index
    %c0_25 = arith.constant 0 : index
    %c0_26 = arith.constant 0 : index
    %22 = vector.load %arg5[%c0_23, %c2_24, %c0_25, %c0_26] : memref<1x3x1x8xf32, #tpu.memory_space<vmem>>, vector<1x1x1x8xf32>
    %23 = vector.shape_cast %22 : vector<1x1x1x8xf32> to vector<1x8xf32>
    %24 = vector.broadcast %23 : vector<1x8xf32> to vector<16x8xf32>
    %25 = arith.addf %21, %24 : vector<16x8xf32>
    %cst_27 = arith.constant dense<0.000000e+00> : vector<16x16xf32>
    %26 = tpu.matmul %11, %18, %cst_27 {dimension_numbers = #tpu.dot_dimension_numbers<[1], [1], [0], [0], [0, 0, 1, 0], [], []>} : vector<16x8xf32>, vector<16x8xf32>, vector<16x16xf32> -> vector<16x16xf32>
    %cst_28 = arith.constant 0.353553385 : f32
    %27 = vector.broadcast %cst_28 : f32 to vector<16x16xf32>
    %28 = arith.mulf %26, %27 : vector<16x16xf32>
    %cst_29 = arith.constant dense<0xFF800000> : vector<16xf32>
    %29 = vector.multi_reduction <maximumf>, %28, %cst_29 [1] : vector<16x16xf32> to vector<16xf32>
    %30 = vector.shape_cast %29 : vector<16xf32> to vector<16x1xf32>
    %31 = vector.broadcast %30 : vector<16x1xf32> to vector<16x16xf32>
    %32 = arith.subf %28, %31 : vector<16x16xf32>
    %33 = math.exp %32 : vector<16x16xf32>
    %cst_30 = arith.constant dense<0.000000e+00> : vector<16xf32>
    %34 = vector.multi_reduction <add>, %33, %cst_30 [1] : vector<16x16xf32> to vector<16xf32>
    %35 = vector.shape_cast %34 : vector<16xf32> to vector<16x1xf32>
    %36 = tpu.reciprocal %35 : vector<16x1xf32> -> vector<16x1xf32>
    %37 = vector.broadcast %36 : vector<16x1xf32> to vector<16x16xf32>
    %38 = arith.mulf %33, %37 : vector<16x16xf32>
    %39 = arith.negf %26 : vector<16x16xf32>
    %40 = math.exp %39 : vector<16x16xf32>
    %cst_31 = arith.constant 1.000000e+00 : f32
    %41 = vector.broadcast %cst_31 : f32 to vector<16x16xf32>
    %42 = arith.addf %41, %40 : vector<16x16xf32>
    %43 = arith.divf %41, %42 : vector<16x16xf32>
    %c0_32 = arith.constant 0 : index
    %c0_33 = arith.constant 0 : index
    %c0_34 = arith.constant 0 : index
    %c0_35 = arith.constant 0 : index
    %44 = vector.load %arg3[%c0_32, %c0_33, %c0_34, %c0_35] : memref<1x1x16x16xf32, #tpu.memory_space<vmem>>, vector<1x1x16x16xf32>
    %45 = vector.shape_cast %44 : vector<1x1x16x16xf32> to vector<16x16xf32>
    %46 = arith.cmpf ogt, %45, %43 : vector<16x16xf32>
    %47 = arith.extui %46 : vector<16x16xi1> to vector<16x16xi32>
    %48 = arith.sitofp %47 : vector<16x16xi32> to vector<16x16xf32>
    %49 = arith.mulf %38, %48 : vector<16x16xf32>
    %c0_36 = arith.constant 0 : index
    %c0_37 = arith.constant 0 : index
    %c0_38 = arith.constant 0 : index
    %c0_39 = arith.constant 0 : index
    %50 = vector.load %arg9[%c0_36, %c0_37, %c0_38, %c0_39] : memref<1x1x16x16xf32, #tpu.memory_space<vmem>>, vector<1x1x16x16xf32>
    %51 = vector.shape_cast %50 : vector<1x1x16x16xf32> to vector<16x16xf32>
    %52 = vector.shape_cast %38 : vector<16x16xf32> to vector<1x1x16x16xf32>
    tpu.vector_store %arg9[%c0_36, %c0_37, %c0_38, %c0_39], %52 {strides = array<i32>} : memref<1x1x16x16xf32, #tpu.memory_space<vmem>>, vector<1x1x16x16xf32>,
    %c0_40 = arith.constant 0 : index
    %c0_41 = arith.constant 0 : index
    %c0_42 = arith.constant 0 : index
    %c0_43 = arith.constant 0 : index
    %53 = vector.load %arg10[%c0_40, %c0_41, %c0_42, %c0_43] : memref<1x1x16x16xf32, #tpu.memory_space<vmem>>, vector<1x1x16x16xf32>
    %54 = vector.shape_cast %53 : vector<1x1x16x16xf32> to vector<16x16xf32>
    %55 = vector.shape_cast %43 : vector<16x16xf32> to vector<1x1x16x16xf32>
    tpu.vector_store %arg10[%c0_40, %c0_41, %c0_42, %c0_43], %55 {strides = array<i32>} : memref<1x1x16x16xf32, #tpu.memory_space<vmem>>, vector<1x1x16x16xf32>,
    %cst_44 = arith.constant dense<0.000000e+00> : vector<16x8xf32>
    %56 = tpu.matmul %49, %25, %cst_44 {dimension_numbers = #tpu.dot_dimension_numbers<[1], [0], [0], [1], [0, 0, 1, 1], [], []>} : vector<16x16xf32>, vector<16x8xf32>, vector<16x8xf32> -> vector<16x8xf32>
    %c0_45 = arith.constant 0 : index
    %c0_46 = arith.constant 0 : index
    %57 = vector.load %arg11[%c0_45, %c0_46] : memref<16x32xf32, #tpu.memory_space<vmem>>, vector<16x32xf32>
    %c0_47 = arith.constant 0 : index
    %c0_48 = arith.constant 0 : index
    %c0_49 = arith.constant 0 : index
    %58 = vector.load %arg6[%c0_47, %c0_48, %c0_49] : memref<1x8x32xf32, #tpu.memory_space<vmem>>, vector<1x8x32xf32>
    %59 = vector.shape_cast %58 : vector<1x8x32xf32> to vector<8x32xf32>
    %cst_50 = arith.constant dense<0.000000e+00> : vector<16x32xf32>
    %60 = tpu.matmul %56, %59, %cst_50 {dimension_numbers = #tpu.dot_dimension_numbers<[1], [0], [0], [1], [0, 0, 1, 1], [], []>} : vector<16x8xf32>, vector<8x32xf32>, vector<16x32xf32> -> vector<16x32xf32>
    %61 = arith.addf %57, %60 : vector<16x32xf32>
    %c0_51 = arith.constant 0 : index
    %c0_52 = arith.constant 0 : index
    %62 = vector.load %arg11[%c0_51, %c0_52] : memref<16x32xf32, #tpu.memory_space<vmem>>, vector<16x32xf32>
    tpu.vector_store %arg11[%c0_51, %c0_52], %61 {strides = array<i32>} : memref<16x32xf32, #tpu.memory_space<vmem>>, vector<16x32xf32>,
    %c3_i32 = arith.constant 3 : i32
    %63 = arith.cmpi eq, %arg1, %c3_i32 : i32
    %64 = arith.extui %63 : i1 to i32
    %c0_i32_53 = arith.constant 0 : i32
    %65 = arith.cmpi ne, %64, %c0_i32_53 : i32
    scf.if %65 {
      %c0_54 = arith.constant 0 : index
      %c0_55 = arith.constant 0 : index
      %66 = vector.load %arg11[%c0_54, %c0_55] : memref<16x32xf32, #tpu.memory_space<vmem>>, vector<16x32xf32>
      %c0_56 = arith.constant 0 : index
      %c0_57 = arith.constant 0 : index
      %67 = vector.load %arg7[%c0_56, %c0_57] : memref<1x32xf32, #tpu.memory_space<vmem>>, vector<1x32xf32>
      %68 = vector.broadcast %67 : vector<1x32xf32> to vector<16x32xf32>
      %69 = arith.addf %66, %68 : vector<16x32xf32>
      %70 = vector.shape_cast %69 : vector<16x32xf32> to vector<1x16x32xf32>
      %c0_58 = arith.constant 0 : index
      %c0_59 = arith.constant 0 : index
      %c0_60 = arith.constant 0 : index
      %71 = vector.load %arg8[%c0_58, %c0_59, %c0_60] : memref<1x16x32xf32, #tpu.memory_space<vmem>>, vector<1x16x32xf32>
      tpu.vector_store %arg8[%c0_58, %c0_59, %c0_60], %70 {strides = array<i32>} : memref<1x16x32xf32, #tpu.memory_space<vmem>>, vector<1x16x32xf32>,
    } else {
    }
    return
  }
  func.func @transform_0(%arg0: i32, %arg1: i32) -> (i32, i32, i32) {
    %c0_i32 = arith.constant 0 : i32
    %c0_i32_0 = arith.constant 0 : i32
    %c0_i32_1 = arith.constant 0 : i32
    return %arg0, %c0_i32, %c0_i32_0 : i32, i32, i32
  }
  func.func @transform_1(%arg0: i32, %arg1: i32) -> (i32, i32, i32, i32) {
    %c0_i32 = arith.constant 0 : i32
    %c0_i32_0 = arith.constant 0 : i32
    %c0_i32_1 = arith.constant 0 : i32
    return %arg0, %arg1, %c0_i32, %c0_i32_0 : i32, i32, i32, i32
  }
  func.func @transform_2(%arg0: i32, %arg1: i32) -> (i32, i32, i32, i32) {
    %c0_i32 = arith.constant 0 : i32
    %c0_i32_0 = arith.constant 0 : i32
    %c0_i32_1 = arith.constant 0 : i32
    %c0_i32_2 = arith.constant 0 : i32
    return %arg1, %c0_i32, %c0_i32_0, %c0_i32_1 : i32, i32, i32, i32
  }
  func.func @transform_3(%arg0: i32, %arg1: i32) -> (i32, i32, i32, i32) {
    %c0_i32 = arith.constant 0 : i32
    %c0_i32_0 = arith.constant 0 : i32
    %c0_i32_1 = arith.constant 0 : i32
    %c0_i32_2 = arith.constant 0 : i32
    return %arg1, %c0_i32, %c0_i32_0, %c0_i32_1 : i32, i32, i32, i32
  }
  func.func @transform_4(%arg0: i32, %arg1: i32) -> (i32, i32, i32) {
    %c0_i32 = arith.constant 0 : i32
    %c0_i32_0 = arith.constant 0 : i32
    %c0_i32_1 = arith.constant 0 : i32
    return %arg1, %c0_i32, %c0_i32_0 : i32, i32, i32
  }
  func.func @transform_5(%arg0: i32, %arg1: i32) -> (i32, i32) {
    %c0_i32 = arith.constant 0 : i32
    %c0_i32_0 = arith.constant 0 : i32
    %c0_i32_1 = arith.constant 0 : i32
    return %c0_i32, %c0_i32_0 : i32, i32
  }
  func.func @transform_6(%arg0: i32, %arg1: i32) -> (i32, i32, i32) {
    %c0_i32 = arith.constant 0 : i32
    %c0_i32_0 = arith.constant 0 : i32
    %c0_i32_1 = arith.constant 0 : i32
    return %arg0, %c0_i32, %c0_i32_0 : i32, i32, i32
  }
  func.func @transform_7(%arg0: i32, %arg1: i32) -> (i32, i32, i32, i32) {
    %c0_i32 = arith.constant 0 : i32
    %c0_i32_0 = arith.constant 0 : i32
    %c0_i32_1 = arith.constant 0 : i32
    return %arg0, %arg1, %c0_i32, %c0_i32_0 : i32, i32, i32, i32
  }
  func.func @transform_8(%arg0: i32, %arg1: i32) -> (i32, i32, i32, i32) {
    %c0_i32 = arith.constant 0 : i32
    %c0_i32_0 = arith.constant 0 : i32
    %c0_i32_1 = arith.constant 0 : i32
    return %arg0, %arg1, %c0_i32, %c0_i32_0 : i32, i32, i32, i32
  }
}

</mosaic_0001>

<llo_original>
// kernel: tpu_custom_call.1
$region0: #{tpu_custom_call.1}
  #allocation0 [shape = 'u32[]', space=smem, size = 0x4, offset = 0x4, fixed_abs, tag = 'smem constant byte address 0x4 - core index']
  #allocation1 [shape = 'u32[144,128]{1,0:T(1,128)}', space=vmem, size = 0x12000, scoped, tag = 'internal scratch']
  #allocation2 [shape = 'f32[16,32]{1,0:T(8,128)}', space=vmem, size = 0x2000, scoped, tag = 'scratch operand']
  %s0 = inlined_call_operand.vmem [shape: f32[2,16,32], index: 0, kind: input, shape index: {}]
  %s1 = inlined_call_operand.vmem [shape: f32[2,4,16,16], index: 1, kind: input, shape index: {}]
  %s2 = inlined_call_operand.vmem [shape: f32[4,3,32,8], index: 2, kind: input, shape index: {}]
  %s3 = inlined_call_operand.vmem [shape: f32[4,3,1,8], index: 3, kind: input, shape index: {}]
  %s4 = inlined_call_operand.vmem [shape: f32[4,8,32], index: 4, kind: input, shape index: {}]
  %s5 = inlined_call_operand.vmem [shape: f32[1,32], index: 5, kind: input, shape index: {}]
  %s6 = inlined_call_operand.hbm [shape: f32[2,16,32], index: 6, kind: output, shape index: {0}]
  %s7 = inlined_call_operand.hbm [shape: f32[2,4,16,16], index: 7, kind: output, shape index: {1}]
  %s8 = inlined_call_operand.hbm [shape: f32[2,4,16,16], index: 8, kind: output, shape index: {2}]
  %9 = xla_tuple %s6, %s7, %s8
  %s10 = sld [smem:[#allocation0]]
  $region81: #{tpu_custom_call.1} parent=0
    _
  %s12 = ssub.s32 1, %s10
  %s13 = scalar_select 0, %s12, %s10
  $region1: #{tpu_custom_call.1} parent=0
    #allocation3 [shape = 'u8[16384]{0}', space=vmem, size = 0x4000, scoped, tag = 'output window, operand 0']
    #allocation4 [shape = 's32[2]{0}', space=sflag, size = 0x8, scoped, tag = 'scoped memory for tpu_custom_call.1']
    #allocation5 [shape = 'u8[16384]{0}', space=vmem, size = 0x4000, scoped, tag = 'output window, operand 1']
    #allocation6 [shape = 's32[2]{0}', space=sflag, size = 0x8, scoped, tag = 'scoped memory for tpu_custom_call.1']
    #allocation7 [shape = 'u8[16384]{0}', space=vmem, size = 0x4000, scoped, tag = 'output window, operand 2']
    %14 = vsyncpa [#allocation4], 0
    %s15 = scalar_lea.sflag [#allocation4], 1
    %16 = vsyncpa %s15, 0
    %17 = vsyncpa [#allocation6], 0
    %s18 = scalar_lea.sflag [#allocation6], 1
    %19 = vsyncpa %s18, 0
    loop: start=0, step=1, limit=10
    $region2: #{tpu_custom_call.1} parent=1 // loop_pre_header
      _
    $region3: #{tpu_custom_call.1} parent=1 // loop_header
      %s21 = sphi 0, %s25
      %p22 = scmp.ge.s32.totalorder %s21, 10
      %s28 = sphi 0, %s40
      %s29 = sphi 0, %s36
      %s30 = sphi 0, %s28
      %s31 = sphi 0, %s29
      %s32 = sphi 0, %s30
      %s33 = sphi 0, %s31
      %s43 = sphi 0, %s45
      %s46 = sphi 0, %s43
      %s47 = sphi 0, %s46
      %s63 = sphi 0, %s47
      %s71 = sphi 0, %s73
      %s74 = sphi 0, %s71
      %s75 = sphi 0, %s74
      %s91 = sphi 0, %s75
      %s97 = sphi 0, %s99
      %s100 = sphi 0, %s97
      %s101 = sphi 0, %s100
      %s117 = sphi 0, %s101
      %s123 = sphi 0, %s125
      %s126 = sphi 0, %s123
      %s127 = sphi 0, %s126
      %s143 = sphi 0, %s127
      %s149 = sphi 0, %s151
      %s152 = sphi 0, %s149
      %s153 = sphi 0, %s152
      %s169 = sphi 0, %s153
      %s173 = sphi 0, %s173
      %s175 = sphi 0, %s173
      %s176 = sphi 0, %s175
      %s190 = sphi 0, %s176
      %s196 = sphi 0, %s198
      %s199 = sphi 0, %s196
      %s200 = sphi 0, %s199
      %s216 = sphi 0, %s200
      %s224 = sphi 0, %s226
      %s227 = sphi 0, %s224
      %s228 = sphi 0, %s227
      %s244 = sphi 0, %s228
      %s252 = sphi 0, %s254
      %s255 = sphi 0, %s252
      %s256 = sphi 0, %s255
      %s272 = sphi 0, %s256
    $region4: #{tpu_custom_call.1} parent=1 // loop_header_branch
      %24 = sbr.rel (%p22) target = $region8
    $region5: #{tpu_custom_call.1} parent=1 // loop_body
      %s26 = ssub.s32 %s21, 1
      %s27 = ssub.s32 %s21, 2
      %s34 = sadd.s32 1, %s29
      %p35 = scmp.ge.s32.totalorder %s34, 4
      %s36 = scalar_select %p35, 0, %s34
      %s37 = sadd.s32 1, %s28
      %s38 = scalar_select %p35, %s37, %s28
      %p39 = scmp.ge.s32.totalorder %s38, 2
      %s40 = scalar_select %p39, 0, %s38
      %s41 = ssub.s32 %s28, %s40
      %p42 = scmp.eq.s32.totalorder %s41, 0
      %s44 = sadd.s32 %s43, 1
      %s45 = scalar_select %p42, %s43, %s44
      %p48 = pneg %p42
      %p49 = scmp.eq.s32.totalorder %s21, 7
      %p50 = por %p48, %p49
      %p51 = scmp.ne.s32.totalorder %s43, %s46
      %p52 = scmp.eq.s32.totalorder %s21, 0
      %p53 = por %p51, %p52
      %p54 = scmp.ne.s32.totalorder %s43, %s46
      %p55 = scmp.eq.s32.totalorder %s26, 7
      %p56 = por %p54, %p55
      %p57 = scmp.ne.s32.totalorder %s46, %s47
      %p58 = scmp.eq.s32.totalorder %s26, 0
      %p59 = por %p57, %p58
      %p60 = scmp.ne.s32.totalorder %s46, %s47
      %p61 = scmp.eq.s32.totalorder %s27, 7
      %p62 = por %p60, %p61
      %p64 = scmp.ne.s32.totalorder %s47, %s63
      %p65 = scmp.eq.s32.totalorder %s27, 0
      %p66 = por %p64, %p65
      %s67 = ssub.s32 %s28, %s40
      %s68 = ssub.s32 %s29, %s36
      %s69 = sor.u32 %s67, %s68
      %p70 = scmp.eq.s32.totalorder %s69, 0
      %s72 = sadd.s32 %s71, 1
      %s73 = scalar_select %p70, %s71, %s72
      %p76 = pneg %p70
      %p77 = scmp.eq.s32.totalorder %s21, 7
      %p78 = por %p76, %p77
      %p79 = scmp.ne.s32.totalorder %s71, %s74
      %p80 = scmp.eq.s32.totalorder %s21, 0
      %p81 = por %p79, %p80
      %p82 = scmp.ne.s32.totalorder %s71, %s74
      %p83 = scmp.eq.s32.totalorder %s26, 7
      %p84 = por %p82, %p83
      %p85 = scmp.ne.s32.totalorder %s74, %s75
      %p86 = scmp.eq.s32.totalorder %s26, 0
      %p87 = por %p85, %p86
      %p88 = scmp.ne.s32.totalorder %s74, %s75
      %p89 = scmp.eq.s32.totalorder %s27, 7
      %p90 = por %p88, %p89
      %p92 = scmp.ne.s32.totalorder %s75, %s91
      %p93 = scmp.eq.s32.totalorder %s27, 0
      %p94 = por %p92, %p93
      %s95 = ssub.s32 %s29, %s36
      %p96 = scmp.eq.s32.totalorder %s95, 0
      %s98 = sadd.s32 %s97, 1
      %s99 = scalar_select %p96, %s97, %s98
      %p102 = pneg %p96
      %p103 = scmp.eq.s32.totalorder %s21, 7
      %p104 = por %p102, %p103
      %p105 = scmp.ne.s32.totalorder %s97, %s100
      %p106 = scmp.eq.s32.totalorder %s21, 0
      %p107 = por %p105, %p106
      %p108 = scmp.ne.s32.totalorder %s97, %s100
      %p109 = scmp.eq.s32.totalorder %s26, 7
      %p110 = por %p108, %p109
      %p111 = scmp.ne.s32.totalorder %s100, %s101
      %p112 = scmp.eq.s32.totalorder %s26, 0
      %p113 = por %p111, %p112
      %p114 = scmp.ne.s32.totalorder %s100, %s101
      %p115 = scmp.eq.s32.totalorder %s27, 7
      %p116 = por %p114, %p115
      %p118 = scmp.ne.s32.totalorder %s101, %s117
      %p119 = scmp.eq.s32.totalorder %s27, 0
      %p120 = por %p118, %p119
      %s121 = ssub.s32 %s29, %s36
      %p122 = scmp.eq.s32.totalorder %s121, 0
      %s124 = sadd.s32 %s123, 1
      %s125 = scalar_select %p122, %s123, %s124
      %p128 = pneg %p122
      %p129 = scmp.eq.s32.totalorder %s21, 7
      %p130 = por %p128, %p129
      %p131 = scmp.ne.s32.totalorder %s123, %s126
      %p132 = scmp.eq.s32.totalorder %s21, 0
      %p133 = por %p131, %p132
      %p134 = scmp.ne.s32.totalorder %s123, %s126
      %p135 = scmp.eq.s32.totalorder %s26, 7
      %p136 = por %p134, %p135
      %p137 = scmp.ne.s32.totalorder %s126, %s127
      %p138 = scmp.eq.s32.totalorder %s26, 0
      %p139 = por %p137, %p138
      %p140 = scmp.ne.s32.totalorder %s126, %s127
      %p141 = scmp.eq.s32.totalorder %s27, 7
      %p142 = por %p140, %p141
      %p144 = scmp.ne.s32.totalorder %s127, %s143
      %p145 = scmp.eq.s32.totalorder %s27, 0
      %p146 = por %p144, %p145
      %s147 = ssub.s32 %s29, %s36
      %p148 = scmp.eq.s32.totalorder %s147, 0
      %s150 = sadd.s32 %s149, 1
      %s151 = scalar_select %p148, %s149, %s150
      %p154 = pneg %p148
      %p155 = scmp.eq.s32.totalorder %s21, 7
      %p156 = por %p154, %p155
      %p157 = scmp.ne.s32.totalorder %s149, %s152
      %p158 = scmp.eq.s32.totalorder %s21, 0
      %p159 = por %p157, %p158
      %p160 = scmp.ne.s32.totalorder %s149, %s152
      %p161 = scmp.eq.s32.totalorder %s26, 7
      %p162 = por %p160, %p161
      %p163 = scmp.ne.s32.totalorder %s152, %s153
      %p164 = scmp.eq.s32.totalorder %s26, 0
      %p165 = por %p163, %p164
      %p166 = scmp.ne.s32.totalorder %s152, %s153
      %p167 = scmp.eq.s32.totalorder %s27, 7
      %p168 = por %p166, %p167
      %p170 = scmp.ne.s32.totalorder %s153, %s169
      %p171 = scmp.eq.s32.totalorder %s27, 0
      %p172 = por %p170, %p171
      %s174 = sadd.s32 %s173, 1
      %p177 = scmp.eq.s32.totalorder %s21, 7
      %p178 = scmp.ne.s32.totalorder %s173, %s175
      %p179 = scmp.eq.s32.totalorder %s21, 0
      %p180 = por %p178, %p179
      %p181 = scmp.ne.s32.totalorder %s173, %s175
      %p182 = scmp.eq.s32.totalorder %s26, 7
      %p183 = por %p181, %p182
      %p184 = scmp.ne.s32.totalorder %s175, %s176
      %p185 = scmp.eq.s32.totalorder %s26, 0
      %p186 = por %p184, %p185
      %p187 = scmp.ne.s32.totalorder %s175, %s176
      %p188 = scmp.eq.s32.totalorder %s27, 7
      %p189 = por %p187, %p188
      %p191 = scmp.ne.s32.totalorder %s176, %s190
      %p192 = scmp.eq.s32.totalorder %s27, 0
      %p193 = por %p191, %p192
      %s194 = ssub.s32 %s28, %s40
      %p195 = scmp.eq.s32.totalorder %s194, 0
      %s197 = sadd.s32 %s196, 1
      %s198 = scalar_select %p195, %s196, %s197
      %p201 = pneg %p195
      %p202 = scmp.eq.s32.totalorder %s21, 7
      %p203 = por %p201, %p202
      %p204 = scmp.ne.s32.totalorder %s196, %s199
      %p205 = scmp.eq.s32.totalorder %s21, 0
      %p206 = por %p204, %p205
      %p207 = scmp.ne.s32.totalorder %s196, %s199
      %p208 = scmp.eq.s32.totalorder %s26, 7
      %p209 = por %p207, %p208
      %p210 = scmp.ne.s32.totalorder %s199, %s200
      %p211 = scmp.eq.s32.totalorder %s26, 0
      %p212 = por %p210, %p211
      %p213 = scmp.ne.s32.totalorder %s199, %s200
      %p214 = scmp.eq.s32.totalorder %s27, 7
      %p215 = por %p213, %p214
      %p217 = scmp.ne.s32.totalorder %s200, %s216
      %p218 = scmp.eq.s32.totalorder %s27, 0
      %p219 = por %p217, %p218
      %s220 = ssub.s32 %s28, %s40
      %s221 = ssub.s32 %s29, %s36
      %s222 = sor.u32 %s220, %s221
      %p223 = scmp.eq.s32.totalorder %s222, 0
      %s225 = sadd.s32 %s224, 1
      %s226 = scalar_select %p223, %s224, %s225
      %p229 = pneg %p223
      %p230 = scmp.eq.s32.totalorder %s21, 7
      %p231 = por %p229, %p230
      %p232 = scmp.ne.s32.totalorder %s224, %s227
      %p233 = scmp.eq.s32.totalorder %s21, 0
      %p234 = por %p232, %p233
      %p235 = scmp.ne.s32.totalorder %s224, %s227
      %p236 = scmp.eq.s32.totalorder %s26, 7
      %p237 = por %p235, %p236
      %p238 = scmp.ne.s32.totalorder %s227, %s228
      %p239 = scmp.eq.s32.totalorder %s26, 0
      %p240 = por %p238, %p239
      %p241 = scmp.ne.s32.totalorder %s227, %s228
      %p242 = scmp.eq.s32.totalorder %s27, 7
      %p243 = por %p241, %p242
      %p245 = scmp.ne.s32.totalorder %s228, %s244
      %p246 = scmp.eq.s32.totalorder %s27, 0
      %p247 = por %p245, %p246
      %s248 = ssub.s32 %s28, %s40
      %s249 = ssub.s32 %s29, %s36
      %s250 = sor.u32 %s248, %s249
      %p251 = scmp.eq.s32.totalorder %s250, 0
      %s253 = sadd.s32 %s252, 1
      %s254 = scalar_select %p251, %s252, %s253
      %p257 = pneg %p251
      %p258 = scmp.eq.s32.totalorder %s21, 7
      %p259 = por %p257, %p258
      %p260 = scmp.ne.s32.totalorder %s252, %s255
      %p261 = scmp.eq.s32.totalorder %s21, 0
      %p262 = por %p260, %p261
      %p263 = scmp.ne.s32.totalorder %s252, %s255
      %p264 = scmp.eq.s32.totalorder %s26, 7
      %p265 = por %p263, %p264
      %p266 = scmp.ne.s32.totalorder %s255, %s256
      %p267 = scmp.eq.s32.totalorder %s26, 0
      %p268 = por %p266, %p267
      %p269 = scmp.ne.s32.totalorder %s255, %s256
      %p270 = scmp.eq.s32.totalorder %s27, 7
      %p271 = por %p269, %p270
      %p273 = scmp.ne.s32.totalorder %s256, %s272
      %p274 = scmp.eq.s32.totalorder %s27, 0
      %p275 = por %p273, %p274
      %p276 = scmp.le.s32.totalorder 1, %s21
      %p277 = scmp.lt.s32.totalorder %s21, 9
      %p278 = pnand %p276, %p277
      %p279 = pneg %p278
      // Predicated region
      $region9: #{tpu_custom_call.1} parent=5 // pred_check
        _
      $region10: #{tpu_custom_call.1} parent=5 // pred_check_branch
        %281 = sbr.rel (%p278) target = $region12
      $region11: #{tpu_custom_call.1} parent=5 // pred_region
        %s282 = ssub.s32 %s21, 1
        // Predicated region
        $region13: #{tpu_custom_call.1} parent=11 // pred_check
          %p283 = pneg %p186
        $region14: #{tpu_custom_call.1} parent=11 // pred_check_branch
          %285 = sbr.rel (%p283) target = $region16
        $region15: #{tpu_custom_call.1} parent=11 // pred_region
          _
        $region16: #{tpu_custom_call.1} parent=11 // pred_fallthru
          _
      $region12: #{tpu_custom_call.1} parent=5 // pred_fallthru
        _
      %p286 = scmp.lt.s32.totalorder %s21, 8
      // Predicated region
      $region17: #{tpu_custom_call.1} parent=5 // pred_check
        %p287 = pneg %p286
      $region18: #{tpu_custom_call.1} parent=5 // pred_check_branch
        %289 = sbr.rel (%p287) target = $region20
      $region19: #{tpu_custom_call.1} parent=5 // pred_region
        // Predicated region
        $region21: #{tpu_custom_call.1} parent=19 // pred_check
          %p290 = pneg %p53
        $region22: #{tpu_custom_call.1} parent=19 // pred_check_branch
          %292 = sbr.rel (%p290) target = $region24
        $region23: #{tpu_custom_call.1} parent=19 // pred_region
          %p293 = scmp.lt.s32.totalorder %s28, 1
          %s294 = scalar_select %p293, %s28, 1
          %s295 = smul.addr %s294, 2
          %s296 = smul.addr %s295, 8
          %s297 = scalar_lea.vmem %s0, %s296
        $region24: #{tpu_custom_call.1} parent=19 // pred_fallthru
          _
        // Predicated region
        $region25: #{tpu_custom_call.1} parent=19 // pred_check
          %p298 = pneg %p81
        $region26: #{tpu_custom_call.1} parent=19 // pred_check_branch
          %300 = sbr.rel (%p298) target = $region28
        $region27: #{tpu_custom_call.1} parent=19 // pred_region
          %p301 = scmp.lt.s32.totalorder %s28, 1
          %s302 = scalar_select %p301, %s28, 1
          %p303 = scmp.lt.s32.totalorder %s29, 3
          %s304 = scalar_select %p303, %s29, 3
          %s305 = smul.addr %s304, 2
          %s306 = smul.addr %s302, 8
          %s307 = sadd.s32 %s305, %s306
          %s308 = smul.addr %s307, 8
          %s309 = scalar_lea.vmem %s1, %s308
        $region28: #{tpu_custom_call.1} parent=19 // pred_fallthru
          _
        // Predicated region
        $region29: #{tpu_custom_call.1} parent=19 // pred_check
          %p310 = pneg %p107
        $region30: #{tpu_custom_call.1} parent=19 // pred_check_branch
          %312 = sbr.rel (%p310) target = $region32
        $region31: #{tpu_custom_call.1} parent=19 // pred_region
          %p313 = scmp.lt.s32.totalorder %s29, 3
          %s314 = scalar_select %p313, %s29, 3
          %s315 = smul.addr %s314, 12
          %s316 = smul.addr %s315, 8
          %s317 = scalar_lea.vmem %s2, %s316
        $region32: #{tpu_custom_call.1} parent=19 // pred_fallthru
          _
        // Predicated region
        $region33: #{tpu_custom_call.1} parent=19 // pred_check
          %p318 = pneg %p133
        $region34: #{tpu_custom_call.1} parent=19 // pred_check_branch
          %320 = sbr.rel (%p318) target = $region36
        $region35: #{tpu_custom_call.1} parent=19 // pred_region
          %p321 = scmp.lt.s32.totalorder %s29, 3
          %s322 = scalar_select %p321, %s29, 3
          %s323 = smul.addr %s322, 3
          %s324 = scalar_lea.vmem %s3, %s323
        $region36: #{tpu_custom_call.1} parent=19 // pred_fallthru
          _
        // Predicated region
        $region37: #{tpu_custom_call.1} parent=19 // pred_check
          %p325 = pneg %p159
        $region38: #{tpu_custom_call.1} parent=19 // pred_check_branch
          %327 = sbr.rel (%p325) target = $region40
        $region39: #{tpu_custom_call.1} parent=19 // pred_region
          %p328 = scmp.lt.s32.totalorder %s29, 3
          %s329 = scalar_select %p328, %s29, 3
          %s330 = smul.addr %s329, 8
          %s331 = scalar_lea.vmem %s4, %s330
        $region40: #{tpu_custom_call.1} parent=19 // pred_fallthru
          _
      $region20: #{tpu_custom_call.1} parent=5 // pred_fallthru
        _
      %p332 = scmp.le.s32.totalorder 1, %s21
      %p333 = scmp.lt.s32.totalorder %s21, 9
      %p334 = pnand %p332, %p333
      %p335 = pneg %p334
      // Predicated region
      $region41: #{tpu_custom_call.1} parent=5 // pred_check
        _
      $region42: #{tpu_custom_call.1} parent=5 // pred_check_branch
        %337 = sbr.rel (%p334) target = $region44
      $region43: #{tpu_custom_call.1} parent=5 // pred_region
        %s338 = ssub.s32 %s21, 1
        %p339 = scmp.lt.s32.totalorder %s30, 1
        %s340 = scalar_select %p339, %s30, 1
        %s341 = smul.addr %s340, 2
        %s342 = smul.addr %s341, 8
        %s343 = scalar_lea.vmem %s0, %s342
        %p344 = pneg %p59
        %p345 = pneg %p56
        %p346 = scmp.lt.s32.totalorder %s30, 1
        %s347 = scalar_select %p346, %s30, 1
        %p348 = scmp.lt.s32.totalorder %s31, 3
        %s349 = scalar_select %p348, %s31, 3
        %s350 = smul.addr %s349, 2
        %s351 = smul.addr %s347, 8
        %s352 = sadd.s32 %s350, %s351
        %s353 = smul.addr %s352, 8
        %s354 = scalar_lea.vmem %s1, %s353
        %p355 = pneg %p87
        %p356 = pneg %p84
        %p357 = scmp.lt.s32.totalorder %s31, 3
        %s358 = scalar_select %p357, %s31, 3
        %s359 = smul.addr %s358, 12
        %s360 = smul.addr %s359, 8
        %s361 = scalar_lea.vmem %s2, %s360
        %p362 = pneg %p113
        %p363 = pneg %p110
        %p364 = scmp.lt.s32.totalorder %s31, 3
        %s365 = scalar_select %p364, %s31, 3
        %s366 = smul.addr %s365, 3
        %s367 = scalar_lea.vmem %s3, %s366
        %p368 = pneg %p139
        %p369 = pneg %p136
        %p370 = scmp.lt.s32.totalorder %s31, 3
        %s371 = scalar_select %p370, %s31, 3
        %s372 = smul.addr %s371, 8
        %s373 = scalar_lea.vmem %s4, %s372
        %p374 = pneg %p165
        %p375 = pneg %p162
        %p376 = pneg %p186
        %p377 = pneg %p183
        %p378 = pneg %p212
        %p379 = pneg %p209
        %s380 = sand.u32 %s199, 1
        %s381 = scalar_lea.sflag [#allocation4], %s380
        %s382 = sand.u32 %s199, 1
        %s383 = smul.addr %s382, 16
        %s384 = scalar_lea.vmem [#allocation3], %s383
        %p385 = pneg %p240
        %p386 = pneg %p237
        %s387 = sand.u32 %s26, 1
        %s388 = scalar_lea.sflag [#allocation6], %s387
        %s389 = sand.u32 %s227, 1
        %s390 = smul.addr %s389, 16
        %s391 = scalar_lea.vmem [#allocation5], %s390
        %p392 = pneg %p268
        %p393 = pneg %p265
        %s394 = sand.u32 %s26, 1
        %s395 = scalar_lea.sflag [#allocation6], %s394
        %s396 = sand.u32 %s255, 1
        %s397 = smul.addr %s396, 16
        %s398 = scalar_lea.vmem [#allocation7], %s397
        %p399 = scmp.lt.s32.totalorder %s30, 1
        %s400 = scalar_select %p399, %s30, 1
        %s401 = smul.addr %s400, 2
        %s402 = smul.addr %s401, 8
        %s403 = scalar_lea.vmem %s0, %s402
        %p404 = scmp.lt.s32.totalorder %s30, 1
        %s405 = scalar_select %p404, %s30, 1
        %p406 = scmp.lt.s32.totalorder %s31, 3
        %s407 = scalar_select %p406, %s31, 3
        %s408 = smul.addr %s407, 2
        %s409 = smul.addr %s405, 8
        %s410 = sadd.s32 %s408, %s409
        %s411 = smul.addr %s410, 8
        %s412 = scalar_lea.vmem %s1, %s411
        %p413 = scmp.lt.s32.totalorder %s31, 3
        %s414 = scalar_select %p413, %s31, 3
        %s415 = smul.addr %s414, 12
        %s416 = smul.addr %s415, 8
        %s417 = scalar_lea.vmem %s2, %s416
        %p418 = scmp.lt.s32.totalorder %s31, 3
        %s419 = scalar_select %p418, %s31, 3
        %s420 = smul.addr %s419, 3
        %s421 = scalar_lea.vmem %s3, %s420
        %p422 = scmp.lt.s32.totalorder %s31, 3
        %s423 = scalar_select %p422, %s31, 3
        %s424 = smul.addr %s423, 8
        %s425 = scalar_lea.vmem %s4, %s424
        %p426 = scmp.eq.s32.totalorder %s31, 0
        // Predicated region
        $region45: #{tpu_custom_call.1} parent=43 // pred_check
          %p427 = pneg %p426
        $region46: #{tpu_custom_call.1} parent=43 // pred_check_branch
          %429 = sbr.rel (%p427) target = $region48
        $region47: #{tpu_custom_call.1} parent=43 // pred_region
          %vm430 = vcmask 261120
          %431 = vst.msk [vmem:[#allocation2] sm:$0xff] %vm430, 0.0
          %432 = vst.msk [vmem:[#allocation2 + $0x8] sm:$0xff] %vm430, 0.0
        $region48: #{tpu_custom_call.1} parent=43 // pred_fallthru
          _
        %v433 = vld [vmem:[%s403] sm:$0xff]
        %v434 = vld [vmem:[%s403 + $0x8] sm:$0xff]
        %v435 = vld [vmem:[%s417] sm:$0xff]
        %v436 = vld [vmem:[%s417 + $0x8] sm:$0xff]
        %v437 = vld [vmem:[%s417 + $0x10] sm:$0xff]
        %v438 = vld [vmem:[%s417 + $0x18] sm:$0xff]
        %v439 = vld [vmem:[%s421] sm:$0x1]
        %v441 = vlaneseq
        %v442 = vshrl.u32 %v441, 7
        %v443 = vsub.s32 0, %v442
        %v444 = vrot.slane %v439, %v443
        %vm446 = vcmask 261120
        %v448 = vsel %vm446, %v433, 0
        %v451 = vsel %vm446, %v434, 0
        %453 = vmatprep.subr.mxu0 0.0
        %454 = vmatpush1.msra.mxu0 0.0
        %455 = vmatprep.subr.mxu0 0.0
        %456 = vmatpush1.msra.mxu0 0.0
        %457 = vmatprep.subr.mxu0 0.0
        %458 = vmatpush1.msra.mxu0 0.0
        %459 = vmatprep.subr.mxu0 0.0
        %460 = vmatpush1.msra.mxu0 0.0
        %461 = vmatprep.subr.mxu0 0.0
        %462 = vmatpush1.msra.mxu0 0.0
        %463 = vmatprep.subr.mxu0 0.0
        %464 = vmatpush1.msra.mxu0 0.0
        %465 = vmatprep.subr.mxu0 0.0
        %466 = vmatpush1.msra.mxu0 0.0
        %467 = vmatprep.subr.mxu0 0.0
        %468 = vmatpush1.msra.mxu0 0.0
        %469 = vmatprep.subr.mxu0 0.0
        %470 = vmatpush1.msra.mxu0 0.0
        %471 = vmatprep.subr.mxu0 0.0
        %472 = vmatpush1.msra.mxu0 0.0
        %473 = vmatprep.subr.mxu0 0.0
        %474 = vmatpush1.msra.mxu0 0.0
        %475 = vmatprep.subr.mxu0 0.0
        %476 = vmatpush1.msra.mxu0 0.0
        %477 = vmatprep.subr.mxu0 0.0
        %478 = vmatpush1.msra.mxu0 %v438
        %479 = vmatprep.subr.mxu0 0.0
        %480 = vmatpush1.msra.mxu0 %v437
        %481 = vmatprep.subr.mxu0 0.0
        %482 = vmatpush1.msra.mxu0 %v436
        %483 = vmatprep.subr.mxu0 0.0
        %484 = vmatpush1.msra.mxu0 %v435
        %485 = vmatprep.subr.mxu0 0.0
        %486 = vmatpush2.msra.mxu0 0.0
        %487 = vmatprep.subr.mxu0 0.0
        %488 = vmatpush2.msra.mxu0 0.0
        %489 = vmatprep.subr.mxu0 0.0
        %490 = vmatpush2.msra.mxu0 0.0
        %491 = vmatprep.subr.mxu0 0.0
        %492 = vmatpush2.msra.mxu0 0.0
        %493 = vmatprep.subr.mxu0 0.0
        %494 = vmatpush2.msra.mxu0 0.0
        %495 = vmatprep.subr.mxu0 0.0
        %496 = vmatpush2.msra.mxu0 0.0
        %497 = vmatprep.subr.mxu0 0.0
        %498 = vmatpush2.msra.mxu0 0.0
        %499 = vmatprep.subr.mxu0 0.0
        %500 = vmatpush2.msra.mxu0 0.0
        %501 = vmatprep.subr.mxu0 0.0
        %502 = vmatpush2.msra.mxu0 0.0
        %503 = vmatprep.subr.mxu0 0.0
        %504 = vmatpush2.msra.mxu0 0.0
        %505 = vmatprep.subr.mxu0 0.0
        %506 = vmatpush2.msra.mxu0 0.0
        %507 = vmatprep.subr.mxu0 0.0
        %508 = vmatpush2.msra.mxu0 0.0
        %509 = vmatprep.subr.mxu0 0.0
        %510 = vmatpush2.msra.mxu0 0.0
        %511 = vmatprep.subr.mxu0 0.0
        %512 = vmatpush2.msra.mxu0 0.0
        %513 = vmatprep.subr.mxu0 0.0
        %514 = vmatpush2.msra.mxu0 0.0
        %515 = vmatprep.subr.mxu0 0.0
        %516 = vmatpush2.msra.mxu0 0.0
        %517 = vmatprep.mubr.f32.mxu0 0.0
        %518 = vmatmul.mubr.f32.gmra.mxu0 %v448
        %v519 = vpop.f32.mrf.mxu0
        %v520 = vadd.f32 %v444, %v519
        %v521 = vpop.f32.mrf.mxu0
        %522 = vmatprep.mubr.f32.mxu0 0.0
        %523 = vmatmul.mubr.f32.gmra.mxu0 %v451
        %v524 = vpop.f32.mrf.mxu0
        %v525 = vadd.f32 %v444, %v524
        %v526 = vpop.f32.mrf.mxu0
        %527 = vdwg.mxu0
        %s528 = scalar_lea.vmem %s417, 32
        %v529 = vld [vmem:[%s528] sm:$0xff]
        %v530 = vld [vmem:[%s528 + $0x8] sm:$0xff]
        %v531 = vld [vmem:[%s528 + $0x10] sm:$0xff]
        %v532 = vld [vmem:[%s528 + $0x18] sm:$0xff]
        %s533 = scalar_lea.vmem %s421, 1
        %v534 = vld [vmem:[%s533] sm:$0x1]
        %v536 = vlaneseq
        %v537 = vshrl.u32 %v536, 7
        %v538 = vsub.s32 0, %v537
        %v539 = vrot.slane %v534, %v538
        %541 = vmatprep.subr.mxu0 0.0
        %542 = vmatpush1.msra.mxu0 0.0
        %543 = vmatprep.subr.mxu0 0.0
        %544 = vmatpush1.msra.mxu0 0.0
        %545 = vmatprep.subr.mxu0 0.0
        %546 = vmatpush1.msra.mxu0 0.0
        %547 = vmatprep.subr.mxu0 0.0
        %548 = vmatpush1.msra.mxu0 0.0
        %549 = vmatprep.subr.mxu0 0.0
        %550 = vmatpush1.msra.mxu0 0.0
        %551 = vmatprep.subr.mxu0 0.0
        %552 = vmatpush1.msra.mxu0 0.0
        %553 = vmatprep.subr.mxu0 0.0
        %554 = vmatpush1.msra.mxu0 0.0
        %555 = vmatprep.subr.mxu0 0.0
        %556 = vmatpush1.msra.mxu0 0.0
        %557 = vmatprep.subr.mxu0 0.0
        %558 = vmatpush1.msra.mxu0 0.0
        %559 = vmatprep.subr.mxu0 0.0
        %560 = vmatpush1.msra.mxu0 0.0
        %561 = vmatprep.subr.mxu0 0.0
        %562 = vmatpush1.msra.mxu0 0.0
        %563 = vmatprep.subr.mxu0 0.0
        %564 = vmatpush1.msra.mxu0 0.0
        %565 = vmatprep.subr.mxu0 0.0
        %566 = vmatpush1.msra.mxu0 %v532
        %567 = vmatprep.subr.mxu0 0.0
        %568 = vmatpush1.msra.mxu0 %v531
        %569 = vmatprep.subr.mxu0 0.0
        %570 = vmatpush1.msra.mxu0 %v530
        %571 = vmatprep.subr.mxu0 0.0
        %572 = vmatpush1.msra.mxu0 %v529
        %573 = vmatprep.subr.mxu0 0.0
        %574 = vmatpush2.msra.mxu0 0.0
        %575 = vmatprep.subr.mxu0 0.0
        %576 = vmatpush2.msra.mxu0 0.0
        %577 = vmatprep.subr.mxu0 0.0
        %578 = vmatpush2.msra.mxu0 0.0
        %579 = vmatprep.subr.mxu0 0.0
        %580 = vmatpush2.msra.mxu0 0.0
        %581 = vmatprep.subr.mxu0 0.0
        %582 = vmatpush2.msra.mxu0 0.0
        %583 = vmatprep.subr.mxu0 0.0
        %584 = vmatpush2.msra.mxu0 0.0
        %585 = vmatprep.subr.mxu0 0.0
        %586 = vmatpush2.msra.mxu0 0.0
        %587 = vmatprep.subr.mxu0 0.0
        %588 = vmatpush2.msra.mxu0 0.0
        %589 = vmatprep.subr.mxu0 0.0
        %590 = vmatpush2.msra.mxu0 0.0
        %591 = vmatprep.subr.mxu0 0.0
        %592 = vmatpush2.msra.mxu0 0.0
        %593 = vmatprep.subr.mxu0 0.0
        %594 = vmatpush2.msra.mxu0 0.0
        %595 = vmatprep.subr.mxu0 0.0
        %596 = vmatpush2.msra.mxu0 0.0
        %597 = vmatprep.subr.mxu0 0.0
        %598 = vmatpush2.msra.mxu0 0.0
        %599 = vmatprep.subr.mxu0 0.0
        %600 = vmatpush2.msra.mxu0 0.0
        %601 = vmatprep.subr.mxu0 0.0
        %602 = vmatpush2.msra.mxu0 0.0
        %603 = vmatprep.subr.mxu0 0.0
        %604 = vmatpush2.msra.mxu0 0.0
        %605 = vmatprep.mubr.f32.mxu0 0.0
        %606 = vmatmul.mubr.f32.gmra.mxu0 %v448
        %v607 = vpop.f32.mrf.mxu0
        %v608 = vadd.f32 %v539, %v607
        %v609 = vpop.f32.mrf.mxu0
        %610 = vmatprep.mubr.f32.mxu0 0.0
        %611 = vmatmul.mubr.f32.gmra.mxu0 %v451
        %v612 = vpop.f32.mrf.mxu0
        %v613 = vadd.f32 %v539, %v612
        %v614 = vpop.f32.mrf.mxu0
        %615 = vdwg.mxu0
        %s616 = scalar_lea.vmem %s417, 64
        %v617 = vld [vmem:[%s616] sm:$0xff]
        %v618 = vld [vmem:[%s616 + $0x8] sm:$0xff]
        %v619 = vld [vmem:[%s616 + $0x10] sm:$0xff]
        %v620 = vld [vmem:[%s616 + $0x18] sm:$0xff]
        %s621 = scalar_lea.vmem %s421, 2
        %v622 = vld [vmem:[%s621] sm:$0x1]
        %v624 = vlaneseq
        %v625 = vshrl.u32 %v624, 7
        %v626 = vsub.s32 0, %v625
        %v627 = vrot.slane %v622, %v626
        %629 = vmatprep.subr.mxu0 0.0
        %630 = vmatpush1.msra.mxu0 0.0
        %631 = vmatprep.subr.mxu0 0.0
        %632 = vmatpush1.msra.mxu0 0.0
        %633 = vmatprep.subr.mxu0 0.0
        %634 = vmatpush1.msra.mxu0 0.0
        %635 = vmatprep.subr.mxu0 0.0
        %636 = vmatpush1.msra.mxu0 0.0
        %637 = vmatprep.subr.mxu0 0.0
        %638 = vmatpush1.msra.mxu0 0.0
        %639 = vmatprep.subr.mxu0 0.0
        %640 = vmatpush1.msra.mxu0 0.0
        %641 = vmatprep.subr.mxu0 0.0
        %642 = vmatpush1.msra.mxu0 0.0
        %643 = vmatprep.subr.mxu0 0.0
        %644 = vmatpush1.msra.mxu0 0.0
        %645 = vmatprep.subr.mxu0 0.0
        %646 = vmatpush1.msra.mxu0 0.0
        %647 = vmatprep.subr.mxu0 0.0
        %648 = vmatpush1.msra.mxu0 0.0
        %649 = vmatprep.subr.mxu0 0.0
        %650 = vmatpush1.msra.mxu0 0.0
        %651 = vmatprep.subr.mxu0 0.0
        %652 = vmatpush1.msra.mxu0 0.0
        %653 = vmatprep.subr.mxu0 0.0
        %654 = vmatpush1.msra.mxu0 %v620
        %655 = vmatprep.subr.mxu0 0.0
        %656 = vmatpush1.msra.mxu0 %v619
        %657 = vmatprep.subr.mxu0 0.0
        %658 = vmatpush1.msra.mxu0 %v618
        %659 = vmatprep.subr.mxu0 0.0
        %660 = vmatpush1.msra.mxu0 %v617
        %661 = vmatprep.subr.mxu0 0.0
        %662 = vmatpush2.msra.mxu0 0.0
        %663 = vmatprep.subr.mxu0 0.0
        %664 = vmatpush2.msra.mxu0 0.0
        %665 = vmatprep.subr.mxu0 0.0
        %666 = vmatpush2.msra.mxu0 0.0
        %667 = vmatprep.subr.mxu0 0.0
        %668 = vmatpush2.msra.mxu0 0.0
        %669 = vmatprep.subr.mxu0 0.0
        %670 = vmatpush2.msra.mxu0 0.0
        %671 = vmatprep.subr.mxu0 0.0
        %672 = vmatpush2.msra.mxu0 0.0
        %673 = vmatprep.subr.mxu0 0.0
        %674 = vmatpush2.msra.mxu0 0.0
        %675 = vmatprep.subr.mxu0 0.0
        %676 = vmatpush2.msra.mxu0 0.0
        %677 = vmatprep.subr.mxu0 0.0
        %678 = vmatpush2.msra.mxu0 0.0
        %679 = vmatprep.subr.mxu0 0.0
        %680 = vmatpush2.msra.mxu0 0.0
        %681 = vmatprep.subr.mxu0 0.0
        %682 = vmatpush2.msra.mxu0 0.0
        %683 = vmatprep.subr.mxu0 0.0
        %684 = vmatpush2.msra.mxu0 0.0
        %685 = vmatprep.subr.mxu0 0.0
        %686 = vmatpush2.msra.mxu0 0.0
        %687 = vmatprep.subr.mxu0 0.0
        %688 = vmatpush2.msra.mxu0 0.0
        %689 = vmatprep.subr.mxu0 0.0
        %690 = vmatpush2.msra.mxu0 0.0
        %691 = vmatprep.subr.mxu0 0.0
        %692 = vmatpush2.msra.mxu0 0.0
        %693 = vmatprep.mubr.f32.mxu0 0.0
        %694 = vmatmul.mubr.f32.gmra.mxu0 %v448
        %v695 = vpop.f32.mrf.mxu0
        %v696 = vadd.f32 %v627, %v695
        %v697 = vpop.f32.mrf.mxu0
        %698 = vmatprep.mubr.f32.mxu0 0.0
        %699 = vmatmul.mubr.f32.gmra.mxu0 %v451
        %v700 = vpop.f32.mrf.mxu0
        %v701 = vadd.f32 %v627, %v700
        %v702 = vpop.f32.mrf.mxu0
        %703 = vdwg.mxu0
        %vm704 = vcmask 64512
        %v706 = vsel %vm704, %v520, 0
        %v709 = vsel %vm704, %v525, 0
        %v712 = vsel %vm704, %v608, 0
        %v715 = vsel %vm704, %v613, 0
        %717 = vmatprep.subr.mxu0 0.0
        %718 = vmatpush1.xpose.msra.mxu0 0.0
        %719 = vmatprep.subr.mxu0 0.0
        %720 = vmatpush1.xpose.msra.mxu0 0.0
        %721 = vmatprep.subr.mxu0 0.0
        %722 = vmatpush1.xpose.msra.mxu0 0.0
        %723 = vmatprep.subr.mxu0 0.0
        %724 = vmatpush1.xpose.msra.mxu0 0.0
        %725 = vmatprep.subr.mxu0 0.0
        %726 = vmatpush1.xpose.msra.mxu0 0.0
        %727 = vmatprep.subr.mxu0 0.0
        %728 = vmatpush1.xpose.msra.mxu0 0.0
        %729 = vmatprep.subr.mxu0 0.0
        %730 = vmatpush1.xpose.msra.mxu0 0.0
        %731 = vmatprep.subr.mxu0 0.0
        %732 = vmatpush1.xpose.msra.mxu0 0.0
        %733 = vmatprep.subr.mxu0 0.0
        %734 = vmatpush1.xpose.msra.mxu0 0.0
        %735 = vmatprep.subr.mxu0 0.0
        %736 = vmatpush1.xpose.msra.mxu0 0.0
        %737 = vmatprep.subr.mxu0 0.0
        %738 = vmatpush1.xpose.msra.mxu0 0.0
        %739 = vmatprep.subr.mxu0 0.0
        %740 = vmatpush1.xpose.msra.mxu0 0.0
        %741 = vmatprep.subr.mxu0 0.0
        %742 = vmatpush1.xpose.msra.mxu0 0.0
        %743 = vmatprep.subr.mxu0 0.0
        %744 = vmatpush1.xpose.msra.mxu0 0.0
        %745 = vmatprep.subr.mxu0 0.0
        %746 = vmatpush1.xpose.msra.mxu0 %v715
        %747 = vmatprep.subr.mxu0 0.0
        %748 = vmatpush1.xpose.msra.mxu0 %v712
        %749 = vmatprep.subr.mxu0 0.0
        %750 = vmatpush2.xpose.msra.mxu0 0.0
        %751 = vmatprep.subr.mxu0 0.0
        %752 = vmatpush2.xpose.msra.mxu0 0.0
        %753 = vmatprep.subr.mxu0 0.0
        %754 = vmatpush2.xpose.msra.mxu0 0.0
        %755 = vmatprep.subr.mxu0 0.0
        %756 = vmatpush2.xpose.msra.mxu0 0.0
        %757 = vmatprep.subr.mxu0 0.0
        %758 = vmatpush2.xpose.msra.mxu0 0.0
        %759 = vmatprep.subr.mxu0 0.0
        %760 = vmatpush2.xpose.msra.mxu0 0.0
        %761 = vmatprep.subr.mxu0 0.0
        %762 = vmatpush2.xpose.msra.mxu0 0.0
        %763 = vmatprep.subr.mxu0 0.0
        %764 = vmatpush2.xpose.msra.mxu0 0.0
        %765 = vmatprep.subr.mxu0 0.0
        %766 = vmatpush2.xpose.msra.mxu0 0.0
        %767 = vmatprep.subr.mxu0 0.0
        %768 = vmatpush2.xpose.msra.mxu0 0.0
        %769 = vmatprep.subr.mxu0 0.0
        %770 = vmatpush2.xpose.msra.mxu0 0.0
        %771 = vmatprep.subr.mxu0 0.0
        %772 = vmatpush2.xpose.msra.mxu0 0.0
        %773 = vmatprep.subr.mxu0 0.0
        %774 = vmatpush2.xpose.msra.mxu0 0.0
        %775 = vmatprep.subr.mxu0 0.0
        %776 = vmatpush2.xpose.msra.mxu0 0.0
        %777 = vmatprep.subr.mxu0 0.0
        %778 = vmatpush2.xpose.msra.mxu0 0.0
        %779 = vmatprep.subr.mxu0 0.0
        %780 = vmatpush2.xpose.msra.mxu0 0.0
        %781 = vmatprep.mubr.f32.mxu0 0.0
        %782 = vmatmul.mubr.f32.gmra.mxu0 %v706
        %v783 = vpop.f32.mrf.mxu0
        %v784 = vadd.f32 0.0, %v783
        %v785 = vpop.f32.mrf.mxu0
        %786 = vmatprep.mubr.f32.mxu0 0.0
        %787 = vmatmul.mubr.f32.gmra.mxu0 %v709
        %v788 = vpop.f32.mrf.mxu0
        %v789 = vadd.f32 0.0, %v788
        %v790 = vpop.f32.mrf.mxu0
        %791 = vdwg.mxu0
        %v792 = vmul.f32 %v784, 0.35355338
        %v793 = vmul.f32 %v789, 0.35355338
        %vm794 = vcmask 130048
        %v795 = vsel %vm794, %v792, -inf
        %796 = vmax.xlane.f32.xlu0 %v795
        %v797 = vpop.xlane.xlu0 %796
        %v798 = vsel %vm794, %v793, -inf
        %799 = vmax.xlane.f32.xlu0 %v798
        %v800 = vpop.xlane.xlu0 %799
        %v801 = vsub.f32 %v792, %v797
        %v802 = vsub.f32 %v793, %v800
        %v803 = vmul.f32 %v801, 1.442695
        %v804 = vpow.pop %v803
        %v805 = vmul.f32 %v802, 1.442695
        %v806 = vpow.pop %v805
        %v807 = vsel %vm794, %v804, 0.0
        %808 = vadd.xlane.f32.xlu0 %v807
        %v809 = vpop.xlane.xlu0 %808
        %v810 = vsel %vm794, %v806, 0.0
        %811 = vadd.xlane.f32.xlu0 %v810
        %v812 = vpop.xlane.xlu0 %811
        %v813 = vrcp.pop %v809
        %v814 = vrcp.pop %v812
        %v815 = vmul.f32 %v804, %v813
        %v816 = vmul.f32 %v806, %v814
        %v817 = vxor.u32 %v784, 2147483648
        %v818 = vxor.u32 %v789, 2147483648
        %v819 = vmul.f32 %v817, 1.442695
        %v820 = vpow.pop %v819
        %v821 = vmul.f32 %v818, 1.442695
        %v822 = vpow.pop %v821
        %v823 = vadd.f32 %v820, 1.0
        %v824 = vadd.f32 %v822, 1.0
        %v825 = vrcp.pop %v823
        %v826 = vmul.f32 1.0, %v825
        %v827 = vrcp.pop %v824
        %v828 = vmul.f32 1.0, %v827
        %v829 = vld [vmem:[%s412] sm:$0xff]
        %v830 = vld [vmem:[%s412 + $0x8] sm:$0xff]
        %vm831 = vcmp.gt.f32.partialorder %v829, %v826
        %vm832 = vcmp.gt.f32.partialorder %v830, %v828
        %v833 = vsel %vm831, 1, 0
        %v834 = vsel %vm832, 1, 0
        %v835 = vcvt.s32.f32 %v833
        %v836 = vcvt.s32.f32 %v834
        %v837 = vmul.f32 %v815, %v835
        %v838 = vmul.f32 %v816, %v836
        %839 = vst.msk [vmem:[%s391] sm:$0xff] %vm794, %v815
        %840 = vst.msk [vmem:[%s391 + $0x8] sm:$0xff] %vm794, %v816
        %841 = vst.msk [vmem:[%s398] sm:$0xff] %vm794, %v826
        %842 = vst.msk [vmem:[%s398 + $0x8] sm:$0xff] %vm794, %v828
        %v844 = vsel %vm794, %v837, 0
        %v847 = vsel %vm794, %v838, 0
        %849 = vmatprep.subr.mxu0 0.0
        %850 = vmatpush1.msra.mxu0 0.0
        %851 = vmatprep.subr.mxu0 0.0
        %852 = vmatpush1.msra.mxu0 0.0
        %853 = vmatprep.subr.mxu0 0.0
        %854 = vmatpush1.msra.mxu0 0.0
        %855 = vmatprep.subr.mxu0 0.0
        %856 = vmatpush1.msra.mxu0 0.0
        %857 = vmatprep.subr.mxu0 0.0
        %858 = vmatpush1.msra.mxu0 0.0
        %859 = vmatprep.subr.mxu0 0.0
        %860 = vmatpush1.msra.mxu0 0.0
        %861 = vmatprep.subr.mxu0 0.0
        %862 = vmatpush1.msra.mxu0 0.0
        %863 = vmatprep.subr.mxu0 0.0
        %864 = vmatpush1.msra.mxu0 0.0
        %865 = vmatprep.subr.mxu0 0.0
        %866 = vmatpush1.msra.mxu0 0.0
        %867 = vmatprep.subr.mxu0 0.0
        %868 = vmatpush1.msra.mxu0 0.0
        %869 = vmatprep.subr.mxu0 0.0
        %870 = vmatpush1.msra.mxu0 0.0
        %871 = vmatprep.subr.mxu0 0.0
        %872 = vmatpush1.msra.mxu0 0.0
        %873 = vmatprep.subr.mxu0 0.0
        %874 = vmatpush1.msra.mxu0 0.0
        %875 = vmatprep.subr.mxu0 0.0
        %876 = vmatpush1.msra.mxu0 0.0
        %877 = vmatprep.subr.mxu0 0.0
        %878 = vmatpush1.msra.mxu0 %v701
        %879 = vmatprep.subr.mxu0 0.0
        %880 = vmatpush1.msra.mxu0 %v696
        %881 = vmatprep.subr.mxu0 0.0
        %882 = vmatpush2.msra.mxu0 0.0
        %883 = vmatprep.subr.mxu0 0.0
        %884 = vmatpush2.msra.mxu0 0.0
        %885 = vmatprep.subr.mxu0 0.0
        %886 = vmatpush2.msra.mxu0 0.0
        %887 = vmatprep.subr.mxu0 0.0
        %888 = vmatpush2.msra.mxu0 0.0
        %889 = vmatprep.subr.mxu0 0.0
        %890 = vmatpush2.msra.mxu0 0.0
        %891 = vmatprep.subr.mxu0 0.0
        %892 = vmatpush2.msra.mxu0 0.0
        %893 = vmatprep.subr.mxu0 0.0
        %894 = vmatpush2.msra.mxu0 0.0
        %895 = vmatprep.subr.mxu0 0.0
        %896 = vmatpush2.msra.mxu0 0.0
        %897 = vmatprep.subr.mxu0 0.0
        %898 = vmatpush2.msra.mxu0 0.0
        %899 = vmatprep.subr.mxu0 0.0
        %900 = vmatpush2.msra.mxu0 0.0
        %901 = vmatprep.subr.mxu0 0.0
        %902 = vmatpush2.msra.mxu0 0.0
        %903 = vmatprep.subr.mxu0 0.0
        %904 = vmatpush2.msra.mxu0 0.0
        %905 = vmatprep.subr.mxu0 0.0
        %906 = vmatpush2.msra.mxu0 0.0
        %907 = vmatprep.subr.mxu0 0.0
        %908 = vmatpush2.msra.mxu0 0.0
        %909 = vmatprep.subr.mxu0 0.0
        %910 = vmatpush2.msra.mxu0 0.0
        %911 = vmatprep.subr.mxu0 0.0
        %912 = vmatpush2.msra.mxu0 0.0
        %913 = vmatprep.mubr.f32.mxu0 0.0
        %914 = vmatmul.mubr.f32.gmra.mxu0 %v844
        %v915 = vpop.f32.mrf.mxu0
        %v916 = vadd.f32 0.0, %v915
        %v917 = vpop.f32.mrf.mxu0
        %918 = vmatprep.mubr.f32.mxu0 0.0
        %919 = vmatmul.mubr.f32.gmra.mxu0 %v847
        %v920 = vpop.f32.mrf.mxu0
        %v921 = vadd.f32 0.0, %v920
        %v922 = vpop.f32.mrf.mxu0
        %923 = vdwg.mxu0
        %v924 = vld [vmem:[#allocation2] sm:$0xff]
        %v925 = vld [vmem:[#allocation2 + $0x8] sm:$0xff]
        %v926 = vld [vmem:[%s425] sm:$0xff]
        %v928 = vsel %vm704, %v916, 0
        %v931 = vsel %vm704, %v921, 0
        %933 = vmatprep.subr.mxu0 0.0
        %934 = vmatpush1.msra.mxu0 0.0
        %935 = vmatprep.subr.mxu0 0.0
        %936 = vmatpush1.msra.mxu0 0.0
        %937 = vmatprep.subr.mxu0 0.0
        %938 = vmatpush1.msra.mxu0 0.0
        %939 = vmatprep.subr.mxu0 0.0
        %940 = vmatpush1.msra.mxu0 0.0
        %941 = vmatprep.subr.mxu0 0.0
        %942 = vmatpush1.msra.mxu0 0.0
        %943 = vmatprep.subr.mxu0 0.0
        %944 = vmatpush1.msra.mxu0 0.0
        %945 = vmatprep.subr.mxu0 0.0
        %946 = vmatpush1.msra.mxu0 0.0
        %947 = vmatprep.subr.mxu0 0.0
        %948 = vmatpush1.msra.mxu0 0.0
        %949 = vmatprep.subr.mxu0 0.0
        %950 = vmatpush1.msra.mxu0 0.0
        %951 = vmatprep.subr.mxu0 0.0
        %952 = vmatpush1.msra.mxu0 0.0
        %953 = vmatprep.subr.mxu0 0.0
        %954 = vmatpush1.msra.mxu0 0.0
        %955 = vmatprep.subr.mxu0 0.0
        %956 = vmatpush1.msra.mxu0 0.0
        %957 = vmatprep.subr.mxu0 0.0
        %958 = vmatpush1.msra.mxu0 0.0
        %959 = vmatprep.subr.mxu0 0.0
        %960 = vmatpush1.msra.mxu0 0.0
        %961 = vmatprep.subr.mxu0 0.0
        %962 = vmatpush1.msra.mxu0 0.0
        %963 = vmatprep.subr.mxu0 0.0
        %964 = vmatpush1.msra.mxu0 %v926
        %965 = vmatprep.subr.mxu0 0.0
        %966 = vmatpush2.msra.mxu0 0.0
        %967 = vmatprep.subr.mxu0 0.0
        %968 = vmatpush2.msra.mxu0 0.0
        %969 = vmatprep.subr.mxu0 0.0
        %970 = vmatpush2.msra.mxu0 0.0
        %971 = vmatprep.subr.mxu0 0.0
        %972 = vmatpush2.msra.mxu0 0.0
        %973 = vmatprep.subr.mxu0 0.0
        %974 = vmatpush2.msra.mxu0 0.0
        %975 = vmatprep.subr.mxu0 0.0
        %976 = vmatpush2.msra.mxu0 0.0
        %977 = vmatprep.subr.mxu0 0.0
        %978 = vmatpush2.msra.mxu0 0.0
        %979 = vmatprep.subr.mxu0 0.0
        %980 = vmatpush2.msra.mxu0 0.0
        %981 = vmatprep.subr.mxu0 0.0
        %982 = vmatpush2.msra.mxu0 0.0
        %983 = vmatprep.subr.mxu0 0.0
        %984 = vmatpush2.msra.mxu0 0.0
        %985 = vmatprep.subr.mxu0 0.0
        %986 = vmatpush2.msra.mxu0 0.0
        %987 = vmatprep.subr.mxu0 0.0
        %988 = vmatpush2.msra.mxu0 0.0
        %989 = vmatprep.subr.mxu0 0.0
        %990 = vmatpush2.msra.mxu0 0.0
        %991 = vmatprep.subr.mxu0 0.0
        %992 = vmatpush2.msra.mxu0 0.0
        %993 = vmatprep.subr.mxu0 0.0
        %994 = vmatpush2.msra.mxu0 0.0
        %995 = vmatprep.subr.mxu0 0.0
        %996 = vmatpush2.msra.mxu0 0.0
        %997 = vmatprep.mubr.f32.mxu0 0.0
        %998 = vmatmul.mubr.f32.gmra.mxu0 %v928
        %v999 = vpop.f32.mrf.mxu0
        %v1000 = vadd.f32 0.0, %v999
        %v1001 = vpop.f32.mrf.mxu0
        %1002 = vmatprep.mubr.f32.mxu0 0.0
        %1003 = vmatmul.mubr.f32.gmra.mxu0 %v931
        %v1004 = vpop.f32.mrf.mxu0
        %v1005 = vadd.f32 0.0, %v1004
        %v1006 = vpop.f32.mrf.mxu0
        %1007 = vdwg.mxu0
        %v1008 = vadd.f32 %v924, %v1000
        %v1009 = vadd.f32 %v925, %v1005
        %1010 = vst.msk [vmem:[#allocation2] sm:$0xff] %vm446, %v1008
        %1011 = vst.msk [vmem:[#allocation2 + $0x8] sm:$0xff] %vm446, %v1009
        %p1012 = scmp.eq.s32.totalorder %s31, 3
        // Predicated region
        $region49: #{tpu_custom_call.1} parent=43 // pred_check
          %p1013 = pneg %p1012
        $region50: #{tpu_custom_call.1} parent=43 // pred_check_branch
          %1015 = sbr.rel (%p1013) target = $region52
        $region51: #{tpu_custom_call.1} parent=43 // pred_region
          %v1016 = vld [vmem:[#allocation2] sm:$0xff]
          %v1017 = vld [vmem:[#allocation2 + $0x8] sm:$0xff]
          %v1018 = vld [vmem:[%s5] sm:$0x1]
          %v1020 = vlaneseq
          %v1021 = vshrl.u32 %v1020, 7
          %v1022 = vsub.s32 0, %v1021
          %v1023 = vrot.slane %v1018, %v1022
          %v1025 = vadd.f32 %v1016, %v1023
          %v1026 = vadd.f32 %v1017, %v1023
          %1027 = vst.msk [vmem:[%s384] sm:$0xff] %vm446, %v1025
          %1028 = vst.msk [vmem:[%s384 + $0x8] sm:$0xff] %vm446, %v1026
        $region52: #{tpu_custom_call.1} parent=43 // pred_fallthru
          _
        %s1029 = sand.u32 %s199, 1
        %s1030 = scalar_lea.sflag [#allocation4], %s1029
        %s1031 = sand.u32 %s199, 1
        %s1032 = smul.addr %s1031, 16
        %s1033 = scalar_lea.vmem [#allocation3], %s1032
        %s1034 = sand.u32 %s26, 1
        %s1035 = scalar_lea.sflag [#allocation6], %s1034
        %s1036 = sand.u32 %s227, 1
        %s1037 = smul.addr %s1036, 16
        %s1038 = scalar_lea.vmem [#allocation5], %s1037
        %s1039 = sand.u32 %s26, 1
        %s1040 = scalar_lea.sflag [#allocation6], %s1039
        %s1041 = sand.u32 %s255, 1
        %s1042 = smul.addr %s1041, 16
        %s1043 = scalar_lea.vmem [#allocation7], %s1042
        // Predicated region
        $region53: #{tpu_custom_call.1} parent=43 // pred_check
          %p1044 = pneg %p209
        $region54: #{tpu_custom_call.1} parent=43 // pred_check_branch
          %1046 = sbr.rel (%p1044) target = $region56
        $region55: #{tpu_custom_call.1} parent=43 // pred_region
          %s1048 = ssub.s32 256, 256
          %1049 = vsyncadd %s1030, %s1048
          %s1050 = smul.addr %s30, 2
          %s1051 = smul.addr %s1050, 128
          %s1052 = scalar_lea.hbm %s6, %s1051
          %s1053 = sshll.u32 %s1033, 4
          %s1054 = int_to_ptr.vmem [resolvable:$true] %s1053
          %1059 = dma.vmem_to_hbm [thread:$0]  %s1054, 256, %s1052, %s1030, 128, 128, 8
        $region56: #{tpu_custom_call.1} parent=43 // pred_fallthru
          _
        // Predicated region
        $region57: #{tpu_custom_call.1} parent=43 // pred_check
          %p1060 = pneg %p237
        $region58: #{tpu_custom_call.1} parent=43 // pred_check_branch
          %1062 = sbr.rel (%p1060) target = $region60
        $region59: #{tpu_custom_call.1} parent=43 // pred_region
          %s1064 = ssub.s32 256, 256
          %1065 = vsyncadd %s1035, %s1064
          %s1066 = smul.addr %s31, 2
          %s1067 = smul.addr %s30, 8
          %s1068 = sadd.s32 %s1066, %s1067
          %s1069 = smul.addr %s1068, 128
          %s1070 = scalar_lea.hbm %s7, %s1069
          %s1071 = sshll.u32 %s1038, 4
          %s1072 = int_to_ptr.vmem [resolvable:$true] %s1071
          %1077 = dma.vmem_to_hbm [thread:$0]  %s1072, 256, %s1070, %s1035, 128, 128, 8
        $region60: #{tpu_custom_call.1} parent=43 // pred_fallthru
          _
        // Predicated region
        $region61: #{tpu_custom_call.1} parent=43 // pred_check
          %p1078 = pneg %p265
        $region62: #{tpu_custom_call.1} parent=43 // pred_check_branch
          %1080 = sbr.rel (%p1078) target = $region64
        $region63: #{tpu_custom_call.1} parent=43 // pred_region
          %s1082 = ssub.s32 256, 256
          %1083 = vsyncadd %s1040, %s1082
          %s1084 = smul.addr %s31, 2
          %s1085 = smul.addr %s30, 8
          %s1086 = sadd.s32 %s1084, %s1085
          %s1087 = smul.addr %s1086, 128
          %s1088 = scalar_lea.hbm %s8, %s1087
          %s1089 = sshll.u32 %s1043, 4
          %s1090 = int_to_ptr.vmem [resolvable:$true] %s1089
          %1095 = dma.vmem_to_hbm [thread:$0]  %s1090, 256, %s1088, %s1040, 128, 128, 8
        $region64: #{tpu_custom_call.1} parent=43 // pred_fallthru
          _
      $region44: #{tpu_custom_call.1} parent=5 // pred_fallthru
        _
      %p1096 = scmp.le.s32.totalorder 2, %s21
      // Predicated region
      $region65: #{tpu_custom_call.1} parent=5 // pred_check
        %p1097 = pneg %p1096
      $region66: #{tpu_custom_call.1} parent=5 // pred_check_branch
        %1099 = sbr.rel (%p1097) target = $region68
      $region67: #{tpu_custom_call.1} parent=5 // pred_region
        %s1100 = ssub.s32 %s21, 2
        // Predicated region
        $region69: #{tpu_custom_call.1} parent=67 // pred_check
          %p1101 = pneg %p215
        $region70: #{tpu_custom_call.1} parent=67 // pred_check_branch
          %1103 = sbr.rel (%p1101) target = $region72
        $region71: #{tpu_custom_call.1} parent=67 // pred_region
          %s1104 = sand.u32 %s200, 1
          %s1105 = scalar_lea.sflag [#allocation4], %s1104
          %s1106 = sand.u32 %s200, 1
          %s1107 = smul.addr %s1106, 16
          %s1108 = scalar_lea.vmem [#allocation3], %s1107
          %1109 = dma.done %s1105, 256
        $region72: #{tpu_custom_call.1} parent=67 // pred_fallthru
          _
        // Predicated region
        $region73: #{tpu_custom_call.1} parent=67 // pred_check
          %p1110 = pneg %p243
        $region74: #{tpu_custom_call.1} parent=67 // pred_check_branch
          %1112 = sbr.rel (%p1110) target = $region76
        $region75: #{tpu_custom_call.1} parent=67 // pred_region
          %s1113 = sand.u32 %s27, 1
          %s1114 = scalar_lea.sflag [#allocation6], %s1113
          %s1115 = sand.u32 %s228, 1
          %s1116 = smul.addr %s1115, 16
          %s1117 = scalar_lea.vmem [#allocation5], %s1116
          %1118 = dma.done %s1114, 256
        $region76: #{tpu_custom_call.1} parent=67 // pred_fallthru
          _
        // Predicated region
        $region77: #{tpu_custom_call.1} parent=67 // pred_check
          %p1119 = pneg %p271
        $region78: #{tpu_custom_call.1} parent=67 // pred_check_branch
          %1121 = sbr.rel (%p1119) target = $region80
        $region79: #{tpu_custom_call.1} parent=67 // pred_region
          %s1122 = sand.u32 %s27, 1
          %s1123 = scalar_lea.sflag [#allocation6], %s1122
          %s1124 = sand.u32 %s256, 1
          %s1125 = smul.addr %s1124, 16
          %s1126 = scalar_lea.vmem [#allocation7], %s1125
          %1127 = dma.done %s1123, 256
        $region80: #{tpu_custom_call.1} parent=67 // pred_fallthru
          _
      $region68: #{tpu_custom_call.1} parent=5 // pred_fallthru
        _
    $region6: #{tpu_custom_call.1} parent=1 // loop_footer
      %s25 = sadd.s32 1, %s21
    $region7: #{tpu_custom_call.1} parent=1 // loop_footer_branch
      %20 = sbr.rel target = $region3
    $region8: #{tpu_custom_call.1} parent=1 // loop_exit
      _
    %1128 = vsyncpa [#allocation4], 1
    %s1129 = scalar_lea.sflag [#allocation4], 1
    %1130 = vsyncpa %s1129, 1
    %1131 = vsyncpa [#allocation6], 1
    %s1132 = scalar_lea.sflag [#allocation6], 1
    %1133 = vsyncpa %s1132, 1

</llo_original>
